<compile_context>
chip_gen: v7x
topology: tpu7x:2x2x1
jax: 0.10.0
libtpu: 0.0.40
codegen_flags: <defaults>
</compile_context>

<pallas_src>
import jax
import jax.numpy as jnp
import numpy as np
from jax.experimental import pallas as pl
from jax.experimental.pallas import tpu as pltpu


def _rootmodel_kernel(x_ref, o_ref):
    x = x_ref[...]
    # RootModel(x) = A(x) + B(x) = (3x+2) + (3x+1) = 6x + 3 (closed form).
    # Python-int constants keep the input dtype (no unwanted promotion).
    o_ref[...] = x * 6 + 3


def rootmodel_forward(x: jax.Array) -> jax.Array:
    """Computes RootModel(x) = A(x) + B(x) elementwise on TPU via Pallas."""
    orig_shape = x.shape
    dtype = x.dtype
    total = x.size

    if total == 0:
        # Degenerate empty tensor: nothing for a kernel to do.
        return x * 6 + 3

    # Lane/sublane-dense padding: last dim exactly 128 lanes, row count a
    # multiple of the packed-vreg sublane count (8 for f32, 16 for bf16, ...).
    itemsize_bits = np.dtype(dtype).itemsize * 8
    pack = max(1, 32 // itemsize_bits)
    chunk = 8 * pack * 128
    padded_total = ((total + chunk - 1) // chunk) * chunk

    flat = x.reshape(-1)
    if padded_total != total:
        flat = jnp.pad(flat, (0, padded_total - total))
    x2d = flat.reshape(padded_total // 128, 128)

    out2d = pl.pallas_call(
        _rootmodel_kernel,
        out_shape=jax.ShapeDtypeStruct(x2d.shape, dtype),
        in_specs=[pl.BlockSpec(memory_space=pltpu.MemorySpace.VMEM)],
        out_specs=pl.BlockSpec(memory_space=pltpu.MemorySpace.VMEM),
        # Output overwrites the input buffer (shapes/dtypes match) — no extra
        # HBM allocation for the result.
        input_output_aliases={0: 0},
    )(x2d)

    out = out2d.reshape(-1)
    if padded_total != total:
        out = out[:total]
    return out.reshape(orig_shape)


if __name__ == "__main__":
    key = jax.random.PRNGKey(0)
    # NCHW input consistent with the module: batch=2, channels=4, 16x16 spatial.
    x = jax.random.normal(key, (2, 4, 16, 16), dtype=jnp.float32)

    y = rootmodel_forward(x)
    jax.block_until_ready(y)

    # Reference check against the closed-form 6x + 3 (== A(x) + B(x)).
    y_ref = 6.0 * x + 3.0
    assert y.shape == x.shape and y.dtype == x.dtype
    assert jnp.allclose(y, y_ref, atol=1e-5, rtol=1e-5)

    print("KERNEL_OK")
</pallas_src>

<mosaic_0001>
module attributes {stable_mosaic.version = 11 : i64} {
  func.func @_rootmodel_kernel(%arg0: memref<16x128xf32, #tpu.memory_space<vmem>>, %arg1: memref<16x128xf32, #tpu.memory_space<vmem>>) attributes {dimension_semantics = [], scalar_prefetch = 0 : i64, scratch_operands = 0 : i64, tpu.core_type = #tpu.core_type<tc>} {
    %c0 = arith.constant 0 : index
    %c0_0 = arith.constant 0 : index
    %0 = vector.load %arg0[%c0, %c0_0] : memref<16x128xf32, #tpu.memory_space<vmem>>, vector<16x128xf32>
    %cst = arith.constant 6.000000e+00 : f32
    %1 = vector.broadcast %cst : f32 to vector<16x128xf32>
    %2 = arith.mulf %0, %1 : vector<16x128xf32>
    %cst_1 = arith.constant 3.000000e+00 : f32
    %3 = vector.broadcast %cst_1 : f32 to vector<16x128xf32>
    %4 = arith.addf %2, %3 : vector<16x128xf32>
    %c0_2 = arith.constant 0 : index
    %c0_3 = arith.constant 0 : index
    %5 = vector.load %arg1[%c0_2, %c0_3] : memref<16x128xf32, #tpu.memory_space<vmem>>, vector<16x128xf32>
    tpu.vector_store %arg1[%c0_2, %c0_3], %4 {strides = array<i32>} : memref<16x128xf32, #tpu.memory_space<vmem>>, vector<16x128xf32>,
    return
  }
}

</mosaic_0001>

<llo_original>
// kernel: tpu_custom_call.1
$region0: #{tpu_custom_call.1}
  #allocation0 [shape = 'u32[]', space=smem, size = 0x4, offset = 0x4, fixed_abs, tag = 'smem constant byte address 0x4 - core index']
  #allocation1 [shape = 'u32[144,128]{1,0:T(1,128)}', space=vmem, size = 0x12000, scoped, tag = 'internal scratch']
  %s0 = inlined_call_operand.hbm [shape: f32[16,128], index: 0, kind: input, shape index: {}, may-alias: {0,1}]
  %s1 = inlined_call_operand.hbm [shape: f32[16,128], index: 1, kind: output, shape index: {}, may-alias: {0,1}]
  %s2 = sld [smem:[#allocation0]]
  $region18: #{tpu_custom_call.1} parent=0
    _
  %s4 = ssub.s32 1, %s2
  %s5 = scalar_select 0, %s4, %s2
  $region1: #{tpu_custom_call.1} parent=0
    #allocation2 [shape = 'u8[8192]{0}', space=vmem, size = 0x2000, scoped, tag = 'input window, operand 0, single buffered']
    #allocation3 [shape = 's32[1]{0}', space=sflag, size = 0x4, scoped, tag = 'scoped memory for tpu_custom_call.1']
    #allocation4 [shape = 's32[1]{0}', space=sflag, size = 0x4, scoped, tag = 'scoped memory for tpu_custom_call.1']
    #allocation5 [shape = 'u8[8192]{0}', space=vmem, size = 0x2000, scoped, tag = 'output window, operand 0, single buffered']
    %6 = vsyncpa [#allocation3], 0
    %7 = vsyncpa [#allocation4], 0
    // Predicated region
    $region2: #{tpu_custom_call.1} parent=1 // pred_check
      _
    $region3: #{tpu_custom_call.1} parent=1 // pred_check_branch
      %9 = sbr.rel (0) target = $region5
    $region4: #{tpu_custom_call.1} parent=1 // pred_region
      %s11 = ssub.s32 256, 256
      %12 = vsyncadd [#allocation3], %s11
      %s13 = sshll.u32 [#allocation2], 4
      %s14 = int_to_ptr.vmem [resolvable:$true] %s13
      %19 = dma.hbm_to_vmem [thread:$0]  %s0, 256, %s14, [#allocation3], 128, 128, 8
    $region5: #{tpu_custom_call.1} parent=1 // pred_fallthru
      _
    // Predicated region
    $region6: #{tpu_custom_call.1} parent=1 // pred_check
      _
    $region7: #{tpu_custom_call.1} parent=1 // pred_check_branch
      %21 = sbr.rel (0) target = $region9
    $region8: #{tpu_custom_call.1} parent=1 // pred_region
      %22 = dma.done [#allocation3], 256
    $region9: #{tpu_custom_call.1} parent=1 // pred_fallthru
      _
    %v23 = vld [vmem:[#allocation2] sm:$0xff]
    %v24 = vld [vmem:[#allocation2 + $0x8] sm:$0xff]
    %v25 = vmul.f32 %v23, 6.0
    %v26 = vmul.f32 %v24, 6.0
    %v27 = vadd.f32 %v25, 3.0
    %v28 = vadd.f32 %v26, 3.0
    %29 = vst [vmem:[#allocation5] sm:$0xff] %v27
    %30 = vst [vmem:[#allocation5 + $0x8] sm:$0xff] %v28
    // Predicated region
    $region10: #{tpu_custom_call.1} parent=1 // pred_check
      _
    $region11: #{tpu_custom_call.1} parent=1 // pred_check_branch
      %32 = sbr.rel (0) target = $region13
    $region12: #{tpu_custom_call.1} parent=1 // pred_region
      %s34 = ssub.s32 256, 256
      %35 = vsyncadd [#allocation4], %s34
      %s36 = sshll.u32 [#allocation5], 4
      %s37 = int_to_ptr.vmem [resolvable:$true] %s36
      %42 = dma.vmem_to_hbm [thread:$0]  %s37, 256, %s1, [#allocation4], 128, 128, 8
    $region13: #{tpu_custom_call.1} parent=1 // pred_fallthru
      _
    // Predicated region
    $region14: #{tpu_custom_call.1} parent=1 // pred_check
      _
    $region15: #{tpu_custom_call.1} parent=1 // pred_check_branch
      %44 = sbr.rel (0) target = $region17
    $region16: #{tpu_custom_call.1} parent=1 // pred_region
      %45 = dma.done [#allocation4], 256
    $region17: #{tpu_custom_call.1} parent=1 // pred_fallthru
      _
    %46 = vsyncpa [#allocation3], 1
    %47 = vsyncpa [#allocation4], 1

</llo_original>
